<compile_context>
chip_gen: v7x
topology: tpu7x:2x2x1
jax: 0.10.0
libtpu: 0.0.40
codegen_flags: <defaults>
</compile_context>

<pallas_src>
import functools

import jax
import jax.numpy as jnp
from jax.experimental import pallas as pl
from jax.experimental.pallas import tpu as pltpu


def seqnet_kernel(x_ref, w1_ref, b1_ref, w2_ref, b2_ref, o_ref, *, seq_len):
    # x_ref: (tb*S, D) -- tb batch rows, each with its S sequence steps folded
    # in, rows ordered b-major / s-minor (row index = b*S + s).
    x = x_ref[...]

    # First layer of the base MLP, fused over all (b, s) rows: one MXU pass.
    h = jnp.dot(x, w1_ref[...], preferred_element_type=jnp.float32)
    h = jnp.maximum(h + b1_ref[...], 0.0)                        # (tb*S, H) f32

    # Sequence mean BEFORE the (linear) second layer:
    #   mean_s(ReLU(x_s W1 + b1) W2 + b2) == mean_s(ReLU(x_s W1 + b1)) W2 + b2
    # Rows are b-major / s-minor, so the reshape is a pure regrouping and the
    # sum(axis=1) is a cheap sublane/XLU reduce (no MXU, no avg matrix).
    tb_s, hdim = h.shape
    tb = tb_s // seq_len
    h_mean = jnp.sum(h.reshape(tb, seq_len, hdim), axis=1) * jnp.float32(1.0 / seq_len)

    # Second layer on the (much smaller) averaged hidden; b2 added once per
    # output row.
    y = jnp.dot(h_mean.astype(w2_ref.dtype), w2_ref[...],
                preferred_element_type=jnp.float32) + b2_ref[...]  # (tb, O)
    o_ref[...] = y.astype(o_ref.dtype)


def seqnet_forward(x_bsd, w1, b1, w2, b2, *, tb=None, use_bf16=False):
    """x_bsd: [B, S, D] (PyTorch layout, seq_dim=1). Returns [B, O]."""
    B, S, D = x_bsd.shape
    H = w1.shape[1]
    O = w2.shape[1]
    out_dtype = x_bsd.dtype

    # Fold seq into batch: contiguous view, no transpose, no extra HBM traffic.
    x_flat = x_bsd.reshape(B * S, D)

    if use_bf16:
        # Matmul operands only; biases / ReLU / mean stay f32 (v5e-safe, and
        # the sequence-mean accumulation should be f32 regardless).
        x_flat = x_flat.astype(jnp.bfloat16)
        w1 = w1.astype(jnp.bfloat16)
        w2 = w2.astype(jnp.bfloat16)

    # Batch tile (rows of the ORIGINAL batch per grid step).
    if tb is None:
        tb = B
        if B * S >= 4096:
            # At scale: aim for ~1024 x rows per block (512-2048 sweet spot),
            # tb a multiple of 8 and a divisor of B.
            cand = max(8, 1024 // S)
            for t in range(min(cand, B), 7, -1):
                if B % t == 0 and t % 8 == 0:
                    tb = t
                    break
    assert B % tb == 0, "batch tile must divide B"
    assert tb == B or (tb % 8 == 0 and (tb * S) % 8 == 0), \
        "partial batch tiles must keep sublane alignment (multiples of 8)"

    grid = (B // tb,)
    kernel = functools.partial(seqnet_kernel, seq_len=S)

    return pl.pallas_call(
        kernel,
        out_shape=jax.ShapeDtypeStruct((B, O), out_dtype),
        grid_spec=pltpu.PrefetchScalarGridSpec(
            num_scalar_prefetch=0,
            grid=grid,
            in_specs=[
                pl.BlockSpec((tb * S, D), lambda i: (i, 0)),   # x rows for this tile
                pl.BlockSpec((D, H), lambda i: (0, 0)),        # W1 (resident)
                pl.BlockSpec((1, H), lambda i: (0, 0)),        # b1
                pl.BlockSpec((H, O), lambda i: (0, 0)),        # W2 (resident)
                pl.BlockSpec((1, O), lambda i: (0, 0)),        # b2
            ],
            out_specs=pl.BlockSpec((tb, O), lambda i: (i, 0)),
        ),
        compiler_params=pltpu.CompilerParams(
            # Independent batch row-tiles: shards across TCs on v7x; harmless
            # serial loop on v5e/v6e.
            dimension_semantics=("parallel",),
        ),
    )(x_flat, w1, b1, w2, b2)


def seqnet_reference(x_bsd, w1, b1, w2, b2):
    """Plain-JAX reference matching the PyTorch SeqNet forward exactly."""
    def base(xi):  # xi: [B, D]
        h = jnp.maximum(xi @ w1 + b1[0], 0.0)
        return h @ w2 + b2[0]
    steps = [base(x_bsd[:, s, :]) for s in range(x_bsd.shape[1])]  # unbind dim=1
    preds = jnp.stack(steps, axis=1)                                # stack dim=1
    return preds.mean(axis=1)                                       # mean dim=1


if __name__ == "__main__":
    B, S, D, H, O = 4, 8, 32, 64, 16
    key = jax.random.PRNGKey(0)
    kx, k1, k2, k3, k4 = jax.random.split(key, 5)

    x = jax.random.normal(kx, (B, S, D), dtype=jnp.float32)
    # Deterministic synthetic parameters for the base MLP (stored as [in, out]).
    w1 = jax.random.normal(k1, (D, H), dtype=jnp.float32) * 0.1
    b1 = jax.random.normal(k2, (1, H), dtype=jnp.float32) * 0.1
    w2 = jax.random.normal(k3, (H, O), dtype=jnp.float32) * 0.1
    b2 = jax.random.normal(k4, (1, O), dtype=jnp.float32) * 0.1

    out = seqnet_forward(x, w1, b1, w2, b2)
    out = jax.block_until_ready(out)

    ref = seqnet_reference(x, w1, b1, w2, b2)
    assert out.shape == (B, O), out.shape
    assert jnp.allclose(out, ref, atol=1e-5, rtol=1e-5), "mismatch vs reference"

    print("KERNEL_OK")
</pallas_src>

<mosaic_0001>
module attributes {stable_mosaic.version = 11 : i64} {
  func.func @seqnet_kernel(%arg0: i32, %arg1: memref<32x32xf32, #tpu.memory_space<vmem>>, %arg2: memref<32x64xf32, #tpu.memory_space<vmem>>, %arg3: memref<1x64xf32, #tpu.memory_space<vmem>>, %arg4: memref<64x16xf32, #tpu.memory_space<vmem>>, %arg5: memref<1x16xf32, #tpu.memory_space<vmem>>, %arg6: memref<4x16xf32, #tpu.memory_space<vmem>>) attributes {dimension_semantics = [#tpu.dimension_semantics<parallel>], iteration_bounds = array<i64: 1>, scalar_prefetch = 0 : i64, scratch_operands = 0 : i64, tpu.core_type = #tpu.core_type<tc>, window_params = [{transform_indices = @transform_0, window_bounds = array<i64: 32, 32>}, {pipeline_mode = #tpu.pipeline_mode<synchronous>, transform_indices = @transform_1, window_bounds = array<i64: 32, 64>}, {pipeline_mode = #tpu.pipeline_mode<synchronous>, transform_indices = @transform_2, window_bounds = array<i64: 1, 64>}, {pipeline_mode = #tpu.pipeline_mode<synchronous>, transform_indices = @transform_3, window_bounds = array<i64: 64, 16>}, {pipeline_mode = #tpu.pipeline_mode<synchronous>, transform_indices = @transform_4, window_bounds = array<i64: 1, 16>}, {transform_indices = @transform_5, window_bounds = array<i64: 4, 16>}]} {
    %c0 = arith.constant 0 : index
    %c0_0 = arith.constant 0 : index
    %0 = vector.load %arg1[%c0, %c0_0] : memref<32x32xf32, #tpu.memory_space<vmem>>, vector<32x32xf32>
    %c0_1 = arith.constant 0 : index
    %c0_2 = arith.constant 0 : index
    %1 = vector.load %arg2[%c0_1, %c0_2] : memref<32x64xf32, #tpu.memory_space<vmem>>, vector<32x64xf32>
    %cst = arith.constant dense<0.000000e+00> : vector<32x64xf32>
    %2 = tpu.matmul %0, %1, %cst {dimension_numbers = #tpu.dot_dimension_numbers<[1], [0], [0], [1], [0, 0, 1, 1], [], []>} : vector<32x32xf32>, vector<32x64xf32>, vector<32x64xf32> -> vector<32x64xf32>
    %c0_3 = arith.constant 0 : index
    %c0_4 = arith.constant 0 : index
    %3 = vector.load %arg3[%c0_3, %c0_4] : memref<1x64xf32, #tpu.memory_space<vmem>>, vector<1x64xf32>
    %4 = vector.broadcast %3 : vector<1x64xf32> to vector<32x64xf32>
    %5 = arith.addf %2, %4 : vector<32x64xf32>
    %cst_5 = arith.constant 0.000000e+00 : f32
    %6 = vector.broadcast %cst_5 : f32 to vector<32x64xf32>
    %7 = arith.maximumf %5, %6 : vector<32x64xf32>
    %8 = vector.shape_cast %7 : vector<32x64xf32> to vector<4x8x64xf32>
    %cst_6 = arith.constant dense<0.000000e+00> : vector<4x64xf32>
    %9 = vector.multi_reduction <add>, %8, %cst_6 [1] : vector<4x8x64xf32> to vector<4x64xf32>
    %cst_7 = arith.constant 1.250000e-01 : f32
    %10 = vector.broadcast %cst_7 : f32 to vector<4x64xf32>
    %11 = arith.mulf %9, %10 : vector<4x64xf32>
    %c0_8 = arith.constant 0 : index
    %c0_9 = arith.constant 0 : index
    %12 = vector.load %arg4[%c0_8, %c0_9] : memref<64x16xf32, #tpu.memory_space<vmem>>, vector<64x16xf32>
    %cst_10 = arith.constant dense<0.000000e+00> : vector<4x16xf32>
    %13 = tpu.matmul %11, %12, %cst_10 {dimension_numbers = #tpu.dot_dimension_numbers<[1], [0], [0], [1], [0, 0, 1, 1], [], []>} : vector<4x64xf32>, vector<64x16xf32>, vector<4x16xf32> -> vector<4x16xf32>
    %c0_11 = arith.constant 0 : index
    %c0_12 = arith.constant 0 : index
    %14 = vector.load %arg5[%c0_11, %c0_12] : memref<1x16xf32, #tpu.memory_space<vmem>>, vector<1x16xf32>
    %15 = vector.broadcast %14 : vector<1x16xf32> to vector<4x16xf32>
    %16 = arith.addf %13, %15 : vector<4x16xf32>
    %c0_13 = arith.constant 0 : index
    %c0_14 = arith.constant 0 : index
    %17 = vector.load %arg6[%c0_13, %c0_14] : memref<4x16xf32, #tpu.memory_space<vmem>>, vector<4x16xf32>
    tpu.vector_store %arg6[%c0_13, %c0_14], %16 {strides = array<i32>} : memref<4x16xf32, #tpu.memory_space<vmem>>, vector<4x16xf32>,
    return
  }
  func.func @transform_0(%arg0: i32) -> (i32, i32) {
    %c0_i32 = arith.constant 0 : i32
    %c0_i32_0 = arith.constant 0 : i32
    return %arg0, %c0_i32 : i32, i32
  }
  func.func @transform_1(%arg0: i32) -> (i32, i32) {
    %c0_i32 = arith.constant 0 : i32
    %c0_i32_0 = arith.constant 0 : i32
    %c0_i32_1 = arith.constant 0 : i32
    return %c0_i32, %c0_i32_0 : i32, i32
  }
  func.func @transform_2(%arg0: i32) -> (i32, i32) {
    %c0_i32 = arith.constant 0 : i32
    %c0_i32_0 = arith.constant 0 : i32
    %c0_i32_1 = arith.constant 0 : i32
    return %c0_i32, %c0_i32_0 : i32, i32
  }
  func.func @transform_3(%arg0: i32) -> (i32, i32) {
    %c0_i32 = arith.constant 0 : i32
    %c0_i32_0 = arith.constant 0 : i32
    %c0_i32_1 = arith.constant 0 : i32
    return %c0_i32, %c0_i32_0 : i32, i32
  }
  func.func @transform_4(%arg0: i32) -> (i32, i32) {
    %c0_i32 = arith.constant 0 : i32
    %c0_i32_0 = arith.constant 0 : i32
    %c0_i32_1 = arith.constant 0 : i32
    return %c0_i32, %c0_i32_0 : i32, i32
  }
  func.func @transform_5(%arg0: i32) -> (i32, i32) {
    %c0_i32 = arith.constant 0 : i32
    %c0_i32_0 = arith.constant 0 : i32
    return %arg0, %c0_i32 : i32, i32
  }
}

</mosaic_0001>

<llo_original>
// kernel: tpu_custom_call.1
$region0: #{tpu_custom_call.1}
  #allocation0 [shape = 'u32[]', space=smem, size = 0x4, offset = 0x4, fixed_abs, tag = 'smem constant byte address 0x4 - core index']
  #allocation1 [shape = 'u32[144,128]{1,0:T(1,128)}', space=vmem, size = 0x12000, scoped, tag = 'internal scratch']
  %s0 = inlined_call_operand.vmem [shape: f32[32,32], index: 0, kind: input, shape index: {}]
  %s1 = inlined_call_operand.vmem [shape: f32[32,64], index: 1, kind: input, shape index: {}]
  %s2 = inlined_call_operand.vmem [shape: f32[1,64], index: 2, kind: input, shape index: {}]
  %s3 = inlined_call_operand.vmem [shape: f32[64,16], index: 3, kind: input, shape index: {}]
  %s4 = inlined_call_operand.vmem [shape: f32[1,16], index: 4, kind: input, shape index: {}]
  %s5 = inlined_call_operand.hbm [shape: f32[4,16], index: 5, kind: output, shape index: {}]
  %s6 = sld [smem:[#allocation0]]
  $region30: #{tpu_custom_call.1} parent=0
    _
  %s8 = ssub.s32 1, %s6
  %s9 = scalar_select 0, %s8, %s6
  $region1: #{tpu_custom_call.1} parent=0
    #allocation2 [shape = 'u8[2048]{0}', space=vmem, size = 0x800, scoped, tag = 'output window, operand 0, single buffered']
    #allocation3 [shape = 's32[1]{0}', space=sflag, size = 0x4, scoped, tag = 'scoped memory for tpu_custom_call.1']
    %10 = vsyncpa [#allocation3], 0
    // Predicated region
    $region2: #{tpu_custom_call.1} parent=1 // pred_check
      _
    $region3: #{tpu_custom_call.1} parent=1 // pred_check_branch
      %12 = sbr.rel (0) target = $region5
    $region4: #{tpu_custom_call.1} parent=1 // pred_region
      _
    $region5: #{tpu_custom_call.1} parent=1 // pred_fallthru
      _
    // Predicated region
    $region6: #{tpu_custom_call.1} parent=1 // pred_check
      _
    $region7: #{tpu_custom_call.1} parent=1 // pred_check_branch
      %14 = sbr.rel (0) target = $region9
    $region8: #{tpu_custom_call.1} parent=1 // pred_region
      _
    $region9: #{tpu_custom_call.1} parent=1 // pred_fallthru
      _
    // Predicated region
    $region10: #{tpu_custom_call.1} parent=1 // pred_check
      _
    $region11: #{tpu_custom_call.1} parent=1 // pred_check_branch
      %16 = sbr.rel (0) target = $region13
    $region12: #{tpu_custom_call.1} parent=1 // pred_region
      _
    $region13: #{tpu_custom_call.1} parent=1 // pred_fallthru
      _
    // Predicated region
    $region14: #{tpu_custom_call.1} parent=1 // pred_check
      _
    $region15: #{tpu_custom_call.1} parent=1 // pred_check_branch
      %18 = sbr.rel (0) target = $region17
    $region16: #{tpu_custom_call.1} parent=1 // pred_region
      _
    $region17: #{tpu_custom_call.1} parent=1 // pred_fallthru
      _
    // Predicated region
    $region18: #{tpu_custom_call.1} parent=1 // pred_check
      _
    $region19: #{tpu_custom_call.1} parent=1 // pred_check_branch
      %20 = sbr.rel (0) target = $region21
    $region20: #{tpu_custom_call.1} parent=1 // pred_region
      _
    $region21: #{tpu_custom_call.1} parent=1 // pred_fallthru
      _
    %v21 = vld [vmem:[%s0] sm:$0xff]
    %v22 = vld [vmem:[%s0 + $0x8] sm:$0xff]
    %v23 = vld [vmem:[%s0 + $0x10] sm:$0xff]
    %v24 = vld [vmem:[%s0 + $0x18] sm:$0xff]
    %v25 = vld [vmem:[%s1] sm:$0xff]
    %v26 = vld [vmem:[%s1 + $0x8] sm:$0xff]
    %v27 = vld [vmem:[%s1 + $0x10] sm:$0xff]
    %v28 = vld [vmem:[%s1 + $0x18] sm:$0xff]
    %v29 = vld [vmem:[%s2] sm:$0x1]
    %v31 = vlaneseq
    %v32 = vshrl.u32 %v31, 7
    %v33 = vsub.s32 0, %v32
    %v34 = vrot.slane %v29, %v33
    %vm36 = vcmask 261120
    %v38 = vsel %vm36, %v21, 0
    %v41 = vsel %vm36, %v22, 0
    %v44 = vsel %vm36, %v23, 0
    %v47 = vsel %vm36, %v24, 0
    %49 = vmatprep.subr.mxu0 0.0
    %50 = vmatpush1.msra.mxu0 %v25
    %51 = vmatprep.subr.mxu0 0.0
    %52 = vmatpush1.msra.mxu0 %v26
    %53 = vmatprep.subr.mxu0 0.0
    %54 = vmatpush1.msra.mxu0 %v27
    %55 = vmatprep.subr.mxu0 0.0
    %56 = vmatpush1.msra.mxu0 %v28
    %57 = vmatprep.subr.mxu0 0.0
    %58 = vmatpush1.msra.mxu0 0.0
    %59 = vmatprep.subr.mxu0 0.0
    %60 = vmatpush1.msra.mxu0 0.0
    %61 = vmatprep.subr.mxu0 0.0
    %62 = vmatpush1.msra.mxu0 0.0
    %63 = vmatprep.subr.mxu0 0.0
    %64 = vmatpush1.msra.mxu0 0.0
    %65 = vmatprep.subr.mxu0 0.0
    %66 = vmatpush1.msra.mxu0 0.0
    %67 = vmatprep.subr.mxu0 0.0
    %68 = vmatpush1.msra.mxu0 0.0
    %69 = vmatprep.subr.mxu0 0.0
    %70 = vmatpush1.msra.mxu0 0.0
    %71 = vmatprep.subr.mxu0 0.0
    %72 = vmatpush1.msra.mxu0 0.0
    %73 = vmatprep.subr.mxu0 0.0
    %74 = vmatpush1.msra.mxu0 0.0
    %75 = vmatprep.subr.mxu0 0.0
    %76 = vmatpush1.msra.mxu0 0.0
    %77 = vmatprep.subr.mxu0 0.0
    %78 = vmatpush1.msra.mxu0 0.0
    %79 = vmatprep.subr.mxu0 0.0
    %80 = vmatpush1.msra.mxu0 0.0
    %81 = vmatprep.subr.mxu0 0.0
    %82 = vmatpush1.msra.mxu0 0.0
    %83 = vmatprep.subr.mxu0 0.0
    %84 = vmatpush1.msra.mxu0 0.0
    %85 = vmatprep.subr.mxu0 0.0
    %86 = vmatpush1.msra.mxu0 0.0
    %87 = vmatprep.subr.mxu0 0.0
    %88 = vmatpush1.msra.mxu0 0.0
    %89 = vmatprep.subr.mxu0 0.0
    %90 = vmatpush1.msra.mxu0 0.0
    %91 = vmatprep.subr.mxu0 0.0
    %92 = vmatpush1.msra.mxu0 0.0
    %93 = vmatprep.subr.mxu0 0.0
    %94 = vmatpush1.msra.mxu0 0.0
    %95 = vmatprep.subr.mxu0 0.0
    %96 = vmatpush1.msra.mxu0 0.0
    %97 = vmatprep.subr.mxu0 0.0
    %98 = vmatpush1.msra.mxu0 0.0
    %99 = vmatprep.subr.mxu0 0.0
    %100 = vmatpush1.msra.mxu0 0.0
    %101 = vmatprep.subr.mxu0 0.0
    %102 = vmatpush1.msra.mxu0 0.0
    %103 = vmatprep.subr.mxu0 0.0
    %104 = vmatpush1.msra.mxu0 0.0
    %105 = vmatprep.subr.mxu0 0.0
    %106 = vmatpush1.msra.mxu0 0.0
    %107 = vmatprep.subr.mxu0 0.0
    %108 = vmatpush1.msra.mxu0 0.0
    %109 = vmatprep.subr.mxu0 0.0
    %110 = vmatpush1.msra.mxu0 0.0
    %111 = vmatprep.subr.mxu0 0.0
    %112 = vmatpush1.msra.mxu0 0.0
    %113 = vmatprep.mubr.f32.mxu0 0.0
    %114 = vmatmul.mubr.f32.gmra.mrb[0].mxu0 %v38
    %v115 = vpop.f32.mrb[0].mxu0
    %v116 = vadd.f32 %v34, %v115
    %v117 = vpop.f32.mrb[0].mxu0
    %118 = vmatprep.mubr.f32.mxu0 0.0
    %119 = vmatmul.mubr.f32.gmra.mrb[0].mxu0 %v41
    %v120 = vpop.f32.mrb[0].mxu0
    %v121 = vadd.f32 %v34, %v120
    %v122 = vpop.f32.mrb[0].mxu0
    %123 = vmatprep.mubr.f32.mxu0 0.0
    %124 = vmatmul.mubr.f32.gmra.mrb[0].mxu0 %v44
    %v125 = vpop.f32.mrb[0].mxu0
    %v126 = vadd.f32 %v34, %v125
    %v127 = vpop.f32.mrb[0].mxu0
    %128 = vmatprep.mubr.f32.mxu0 0.0
    %129 = vmatmul.mubr.f32.gmra.mrb[0].mxu0 %v47
    %v130 = vpop.f32.mrb[0].mxu0
    %v131 = vadd.f32 %v34, %v130
    %v132 = vpop.f32.mrb[0].mxu0
    %133 = vdwg.mxu0
    %v134 = vmax.f32 %v116, 0.0
    %v135 = vmax.f32 %v121, 0.0
    %v136 = vmax.f32 %v126, 0.0
    %v137 = vmax.f32 %v131, 0.0
    %vm138 = vcmask 523264
    %v139 = vsel %vm138, %v134, 0.0
    %v140 = vrot.slane %v139, 4
    %v141 = vadd.f32 %v139, %v140
    %v142 = vrot.slane %v141, 2
    %v143 = vadd.f32 %v141, %v142
    %v144 = vrot.slane %v143, 1
    %v145 = vadd.f32 %v143, %v144
    %v146 = vsel %vm138, %v135, 0.0
    %v147 = vrot.slane %v146, 4
    %v148 = vadd.f32 %v146, %v147
    %v149 = vrot.slane %v148, 2
    %v150 = vadd.f32 %v148, %v149
    %v151 = vrot.slane %v150, 1
    %v152 = vadd.f32 %v150, %v151
    %v153 = vsel %vm138, %v136, 0.0
    %v154 = vrot.slane %v153, 4
    %v155 = vadd.f32 %v153, %v154
    %v156 = vrot.slane %v155, 2
    %v157 = vadd.f32 %v155, %v156
    %v158 = vrot.slane %v157, 1
    %v159 = vadd.f32 %v157, %v158
    %v160 = vsel %vm138, %v137, 0.0
    %v161 = vrot.slane %v160, 4
    %v162 = vadd.f32 %v160, %v161
    %v163 = vrot.slane %v162, 2
    %v164 = vadd.f32 %v162, %v163
    %v165 = vrot.slane %v164, 1
    %v166 = vadd.f32 %v164, %v165
    %v167 = vmul.f32 %v145, 0.125
    %v168 = vmul.f32 %v152, 0.125
    %v169 = vmul.f32 %v159, 0.125
    %v170 = vmul.f32 %v166, 0.125
    %v171 = vld [vmem:[%s3] sm:$0xff]
    %v172 = vld [vmem:[%s3 + $0x8] sm:$0xff]
    %v173 = vld [vmem:[%s3 + $0x10] sm:$0xff]
    %v174 = vld [vmem:[%s3 + $0x18] sm:$0xff]
    %v175 = vld [vmem:[%s3 + $0x20] sm:$0xff]
    %v176 = vld [vmem:[%s3 + $0x28] sm:$0xff]
    %v177 = vld [vmem:[%s3 + $0x30] sm:$0xff]
    %v178 = vld [vmem:[%s3 + $0x38] sm:$0xff]
    %v179 = vld [vmem:[%s4] sm:$0x1]
    %v181 = vlaneseq
    %v182 = vshrl.u32 %v181, 7
    %v183 = vsub.s32 0, %v182
    %v184 = vrot.slane %v179, %v183
    %vm190 = vcmask 1041409
    %v191 = vsel %vm190, %v168, %v167
    %vm192 = vcmask 1042434
    %v193 = vsel %vm192, %v169, %v191
    %vm194 = vcmask 1043459
    %v195 = vsel %vm194, %v170, %v193
    %v196 = vsel %vm138, %v195, 0
    %198 = vmatprep.subr.mxu0 0.0
    %199 = vmatpush1.msra.mxu0 %v171
    %200 = vmatprep.subr.mxu0 0.0
    %201 = vmatpush1.msra.mxu0 %v172
    %202 = vmatprep.subr.mxu0 0.0
    %203 = vmatpush1.msra.mxu0 %v173
    %204 = vmatprep.subr.mxu0 0.0
    %205 = vmatpush1.msra.mxu0 %v174
    %206 = vmatprep.subr.mxu0 0.0
    %207 = vmatpush1.msra.mxu0 %v175
    %208 = vmatprep.subr.mxu0 0.0
    %209 = vmatpush1.msra.mxu0 %v176
    %210 = vmatprep.subr.mxu0 0.0
    %211 = vmatpush1.msra.mxu0 %v177
    %212 = vmatprep.subr.mxu0 0.0
    %213 = vmatpush1.msra.mxu0 %v178
    %214 = vmatprep.subr.mxu0 0.0
    %215 = vmatpush1.msra.mxu0 0.0
    %216 = vmatprep.subr.mxu0 0.0
    %217 = vmatpush1.msra.mxu0 0.0
    %218 = vmatprep.subr.mxu0 0.0
    %219 = vmatpush1.msra.mxu0 0.0
    %220 = vmatprep.subr.mxu0 0.0
    %221 = vmatpush1.msra.mxu0 0.0
    %222 = vmatprep.subr.mxu0 0.0
    %223 = vmatpush1.msra.mxu0 0.0
    %224 = vmatprep.subr.mxu0 0.0
    %225 = vmatpush1.msra.mxu0 0.0
    %226 = vmatprep.subr.mxu0 0.0
    %227 = vmatpush1.msra.mxu0 0.0
    %228 = vmatprep.subr.mxu0 0.0
    %229 = vmatpush1.msra.mxu0 0.0
    %230 = vmatprep.subr.mxu0 0.0
    %231 = vmatpush1.msra.mxu0 0.0
    %232 = vmatprep.subr.mxu0 0.0
    %233 = vmatpush1.msra.mxu0 0.0
    %234 = vmatprep.subr.mxu0 0.0
    %235 = vmatpush1.msra.mxu0 0.0
    %236 = vmatprep.subr.mxu0 0.0
    %237 = vmatpush1.msra.mxu0 0.0
    %238 = vmatprep.subr.mxu0 0.0
    %239 = vmatpush1.msra.mxu0 0.0
    %240 = vmatprep.subr.mxu0 0.0
    %241 = vmatpush1.msra.mxu0 0.0
    %242 = vmatprep.subr.mxu0 0.0
    %243 = vmatpush1.msra.mxu0 0.0
    %244 = vmatprep.subr.mxu0 0.0
    %245 = vmatpush1.msra.mxu0 0.0
    %246 = vmatprep.subr.mxu0 0.0
    %247 = vmatpush1.msra.mxu0 0.0
    %248 = vmatprep.subr.mxu0 0.0
    %249 = vmatpush1.msra.mxu0 0.0
    %250 = vmatprep.subr.mxu0 0.0
    %251 = vmatpush1.msra.mxu0 0.0
    %252 = vmatprep.subr.mxu0 0.0
    %253 = vmatpush1.msra.mxu0 0.0
    %254 = vmatprep.subr.mxu0 0.0
    %255 = vmatpush1.msra.mxu0 0.0
    %256 = vmatprep.subr.mxu0 0.0
    %257 = vmatpush1.msra.mxu0 0.0
    %258 = vmatprep.subr.mxu0 0.0
    %259 = vmatpush1.msra.mxu0 0.0
    %260 = vmatprep.subr.mxu0 0.0
    %261 = vmatpush1.msra.mxu0 0.0
    %262 = vmatprep.mubr.f32.mxu0 0.0
    %263 = vmatmul.mubr.f32.gmra.mrb[0].mxu0 %v196
    %v264 = vpop.f32.mrb[0].mxu0
    %v265 = vadd.f32 %v184, %v264
    %v266 = vpop.f32.mrb[0].mxu0
    %267 = vdwg.mxu0
    %vm268 = vcmask 125952
    %269 = vst.msk [vmem:[#allocation2] sm:$0xf] %vm268, %v265
    // Predicated region
    $region22: #{tpu_custom_call.1} parent=1 // pred_check
      _
    $region23: #{tpu_custom_call.1} parent=1 // pred_check_branch
      %271 = sbr.rel (0) target = $region25
    $region24: #{tpu_custom_call.1} parent=1 // pred_region
      %s273 = ssub.s32 64, 64
      %274 = vsyncadd [#allocation3], %s273
      %s276 = sshll.u32 [#allocation2], 4
      %s277 = int_to_ptr.vmem [resolvable:$true] %s276
      %279 = dma.vmem_to_hbm [thread:$0]  %s277, 64, %s5, [#allocation3]
    $region25: #{tpu_custom_call.1} parent=1 // pred_fallthru
      _
    // Predicated region
    $region26: #{tpu_custom_call.1} parent=1 // pred_check
      _
    $region27: #{tpu_custom_call.1} parent=1 // pred_check_branch
      %281 = sbr.rel (0) target = $region29
    $region28: #{tpu_custom_call.1} parent=1 // pred_region
      %282 = dma.done [#allocation3], 64
    $region29: #{tpu_custom_call.1} parent=1 // pred_fallthru
      _
    %283 = vsyncpa [#allocation3], 1

</llo_original>
